<compile_context>
chip_gen: v7x
topology: tpu7x:2x2x1
jax: 0.10.0
libtpu: 0.0.40
codegen_flags: <defaults>
</compile_context>

<pallas_src>
import functools

import numpy as np
import jax
import jax.numpy as jnp
from jax.experimental import pallas as pl
from jax.experimental.pallas import tpu as pltpu


# ----------------------------------------------------------------------------
# Constant band matrices: fold 1/2-scale, +/- combine, and row/col interleave.
# Output column j of a (4W)-wide row encodes (hp, w, wp) with
#   hp = j // (2W),  w = (j % (2W)) // 2,  wp = j % 2,
# i.e. exactly the contiguous memory order of the final (..., 2H, 2W) image.
# ----------------------------------------------------------------------------
@functools.lru_cache(maxsize=None)
def _iwt_band_matrices(w: int) -> np.ndarray:
    j = np.arange(4 * w)
    hp = j // (2 * w)
    wp = j % 2
    wcol = (j % (2 * w)) // 2
    # signs[band, hp, wp], matching the torch iwt_init formulas:
    #   h[0::2, 0::2] =  x1 - x2 - x3 + x4
    #   h[1::2, 0::2] =  x1 - x2 + x3 - x4
    #   h[0::2, 1::2] =  x1 + x2 - x3 - x4
    #   h[1::2, 1::2] =  x1 + x2 + x3 + x4
    signs = np.array(
        [[[+1, +1], [+1, +1]],
         [[-1, +1], [-1, +1]],
         [[-1, -1], [+1, +1]],
         [[+1, -1], [-1, +1]]], dtype=np.float32)
    m = np.zeros((4, w, 4 * w), np.float32)
    for band in range(4):
        m[band, wcol, j] = 0.5 * signs[band, hp, wp]
    return m


# ----------------------------------------------------------------------------
# Pallas kernel: per row tile, out = sum_band x[band] @ M[band]   (MXU).
# ----------------------------------------------------------------------------
def _iwt_kernel(x_ref, m_ref, o_ref):
    # x_ref: (4, TR, W)   m_ref: (4, W, 4W)   o_ref: (TR, 4W)
    acc = jnp.dot(x_ref[0].astype(jnp.float32), m_ref[0],
                  preferred_element_type=jnp.float32)
    for band in range(1, 4):
        acc = acc + jnp.dot(x_ref[band].astype(jnp.float32), m_ref[band],
                            preferred_element_type=jnp.float32)
    o_ref[...] = acc.astype(o_ref.dtype)


def _pick_row_tile(r: int, max_rows: int = 1024) -> int:
    """Largest multiple-of-8 divisor of r that is <= max_rows, else r itself
    (a single full-extent block is always layout-legal)."""
    t = min(max_rows, r)
    t -= t % 8
    while t >= 8:
        if r % t == 0:
            return t
        t -= 8
    return r


# ----------------------------------------------------------------------------
# Wrapper: only free (contiguous) reshapes at the boundary.
# ----------------------------------------------------------------------------
def iwt_pallas(x):
    """x: (4*B, C, H, W) -> (B, C, 2H, 2W) float32, matching torch iwt_init."""
    b4, c, h, w = x.shape
    assert b4 % 4 == 0, "IWT input batch must be a multiple of 4"
    ob = b4 // 4
    r = ob * c * h

    x_rows = x.reshape(4, r, w)                 # contiguous view, no copy
    m = jnp.asarray(_iwt_band_matrices(w))      # (4, W, 4W), tiny constant

    tr = _pick_row_tile(r)
    grid = (r // tr,)

    out_rows = pl.pallas_call(
        _iwt_kernel,
        out_shape=jax.ShapeDtypeStruct((r, 4 * w), jnp.float32),
        grid=grid,
        in_specs=[
            pl.BlockSpec((4, tr, w), lambda i: (0, i, 0)),
            pl.BlockSpec((4, w, 4 * w), lambda i: (0, 0, 0)),
        ],
        out_specs=pl.BlockSpec((tr, 4 * w), lambda i: (i, 0)),
        compiler_params=pltpu.CompilerParams(
            dimension_semantics=("parallel",)),
    )(x_rows, m)

    # (R, 4W) -> (B, C, H, 2, W, 2) -> (B, C, 2H, 2W): contiguous regroupings,
    # no data movement (row-major order of (h, hp, w, wp) == (2h+hp, 2w+wp)).
    return out_rows.reshape(ob, c, h, 2, w, 2).reshape(ob, c, 2 * h, 2 * w)


# ----------------------------------------------------------------------------
# Pure-JAX reference mirroring the PyTorch math, for validation.
# ----------------------------------------------------------------------------
def iwt_ref(x):
    b4, c, h, w = x.shape
    ob = b4 // 4
    xf = x.astype(jnp.float32)
    x1 = xf[0 * ob:1 * ob] / 2
    x2 = xf[1 * ob:2 * ob] / 2
    x3 = xf[2 * ob:3 * ob] / 2
    x4 = xf[3 * ob:4 * ob] / 2
    out = jnp.zeros((ob, c, 2 * h, 2 * w), jnp.float32)
    out = out.at[:, :, 0::2, 0::2].set(x1 - x2 - x3 + x4)
    out = out.at[:, :, 1::2, 0::2].set(x1 - x2 + x3 - x4)
    out = out.at[:, :, 0::2, 1::2].set(x1 + x2 - x3 - x4)
    out = out.at[:, :, 1::2, 1::2].set(x1 + x2 + x3 + x4)
    return out


if __name__ == "__main__":
    # IWT requires the input batch to hold 4 stacked sub-bands (4 * B = 8).
    in_batch, channels, height, width = 8, 4, 16, 16

    key = jax.random.PRNGKey(0)
    x = jax.random.normal(key, (in_batch, channels, height, width), jnp.float32)

    out = jax.block_until_ready(iwt_pallas(x))
    ref = jax.block_until_ready(iwt_ref(x))

    assert out.shape == (in_batch // 4, channels, 2 * height, 2 * width), out.shape
    assert out.dtype == jnp.float32, out.dtype
    max_err = float(jnp.max(jnp.abs(out - ref)))
    assert bool(jnp.allclose(out, ref, rtol=1e-4, atol=1e-5)), max_err

    print("KERNEL_OK")
</pallas_src>

<mosaic_0001>
module attributes {stable_mosaic.version = 11 : i64} {
  func.func @_iwt_kernel(%arg0: i32, %arg1: memref<4x128x16xf32, #tpu.memory_space<vmem>>, %arg2: memref<4x16x64xf32, #tpu.memory_space<vmem>>, %arg3: memref<128x64xf32, #tpu.memory_space<vmem>>) attributes {dimension_semantics = [#tpu.dimension_semantics<parallel>], iteration_bounds = array<i64: 1>, scalar_prefetch = 0 : i64, scratch_operands = 0 : i64, tpu.core_type = #tpu.core_type<tc>, window_params = [{transform_indices = @transform_0, window_bounds = array<i64: 4, 128, 16>}, {pipeline_mode = #tpu.pipeline_mode<synchronous>, transform_indices = @transform_1, window_bounds = array<i64: 4, 16, 64>}, {transform_indices = @transform_2, window_bounds = array<i64: 128, 64>}]} {
    %c0 = arith.constant 0 : index
    %c0_0 = arith.constant 0 : index
    %c0_1 = arith.constant 0 : index
    %0 = vector.load %arg1[%c0, %c0_0, %c0_1] : memref<4x128x16xf32, #tpu.memory_space<vmem>>, vector<1x128x16xf32>
    %1 = vector.shape_cast %0 : vector<1x128x16xf32> to vector<128x16xf32>
    %c0_2 = arith.constant 0 : index
    %c0_3 = arith.constant 0 : index
    %c0_4 = arith.constant 0 : index
    %2 = vector.load %arg2[%c0_2, %c0_3, %c0_4] : memref<4x16x64xf32, #tpu.memory_space<vmem>>, vector<1x16x64xf32>
    %3 = vector.shape_cast %2 : vector<1x16x64xf32> to vector<16x64xf32>
    %cst = arith.constant dense<0.000000e+00> : vector<128x64xf32>
    %4 = tpu.matmul %1, %3, %cst {dimension_numbers = #tpu.dot_dimension_numbers<[1], [0], [0], [1], [0, 0, 1, 1], [], []>} : vector<128x16xf32>, vector<16x64xf32>, vector<128x64xf32> -> vector<128x64xf32>
    %c1 = arith.constant 1 : index
    %c0_5 = arith.constant 0 : index
    %c0_6 = arith.constant 0 : index
    %5 = vector.load %arg1[%c1, %c0_5, %c0_6] : memref<4x128x16xf32, #tpu.memory_space<vmem>>, vector<1x128x16xf32>
    %6 = vector.shape_cast %5 : vector<1x128x16xf32> to vector<128x16xf32>
    %c1_7 = arith.constant 1 : index
    %c0_8 = arith.constant 0 : index
    %c0_9 = arith.constant 0 : index
    %7 = vector.load %arg2[%c1_7, %c0_8, %c0_9] : memref<4x16x64xf32, #tpu.memory_space<vmem>>, vector<1x16x64xf32>
    %8 = vector.shape_cast %7 : vector<1x16x64xf32> to vector<16x64xf32>
    %cst_10 = arith.constant dense<0.000000e+00> : vector<128x64xf32>
    %9 = tpu.matmul %6, %8, %cst_10 {dimension_numbers = #tpu.dot_dimension_numbers<[1], [0], [0], [1], [0, 0, 1, 1], [], []>} : vector<128x16xf32>, vector<16x64xf32>, vector<128x64xf32> -> vector<128x64xf32>
    %10 = arith.addf %4, %9 : vector<128x64xf32>
    %c2 = arith.constant 2 : index
    %c0_11 = arith.constant 0 : index
    %c0_12 = arith.constant 0 : index
    %11 = vector.load %arg1[%c2, %c0_11, %c0_12] : memref<4x128x16xf32, #tpu.memory_space<vmem>>, vector<1x128x16xf32>
    %12 = vector.shape_cast %11 : vector<1x128x16xf32> to vector<128x16xf32>
    %c2_13 = arith.constant 2 : index
    %c0_14 = arith.constant 0 : index
    %c0_15 = arith.constant 0 : index
    %13 = vector.load %arg2[%c2_13, %c0_14, %c0_15] : memref<4x16x64xf32, #tpu.memory_space<vmem>>, vector<1x16x64xf32>
    %14 = vector.shape_cast %13 : vector<1x16x64xf32> to vector<16x64xf32>
    %cst_16 = arith.constant dense<0.000000e+00> : vector<128x64xf32>
    %15 = tpu.matmul %12, %14, %cst_16 {dimension_numbers = #tpu.dot_dimension_numbers<[1], [0], [0], [1], [0, 0, 1, 1], [], []>} : vector<128x16xf32>, vector<16x64xf32>, vector<128x64xf32> -> vector<128x64xf32>
    %16 = arith.addf %10, %15 : vector<128x64xf32>
    %c3 = arith.constant 3 : index
    %c0_17 = arith.constant 0 : index
    %c0_18 = arith.constant 0 : index
    %17 = vector.load %arg1[%c3, %c0_17, %c0_18] : memref<4x128x16xf32, #tpu.memory_space<vmem>>, vector<1x128x16xf32>
    %18 = vector.shape_cast %17 : vector<1x128x16xf32> to vector<128x16xf32>
    %c3_19 = arith.constant 3 : index
    %c0_20 = arith.constant 0 : index
    %c0_21 = arith.constant 0 : index
    %19 = vector.load %arg2[%c3_19, %c0_20, %c0_21] : memref<4x16x64xf32, #tpu.memory_space<vmem>>, vector<1x16x64xf32>
    %20 = vector.shape_cast %19 : vector<1x16x64xf32> to vector<16x64xf32>
    %cst_22 = arith.constant dense<0.000000e+00> : vector<128x64xf32>
    %21 = tpu.matmul %18, %20, %cst_22 {dimension_numbers = #tpu.dot_dimension_numbers<[1], [0], [0], [1], [0, 0, 1, 1], [], []>} : vector<128x16xf32>, vector<16x64xf32>, vector<128x64xf32> -> vector<128x64xf32>
    %22 = arith.addf %16, %21 : vector<128x64xf32>
    %c0_23 = arith.constant 0 : index
    %c0_24 = arith.constant 0 : index
    %23 = vector.load %arg3[%c0_23, %c0_24] : memref<128x64xf32, #tpu.memory_space<vmem>>, vector<128x64xf32>
    tpu.vector_store %arg3[%c0_23, %c0_24], %22 {strides = array<i32>} : memref<128x64xf32, #tpu.memory_space<vmem>>, vector<128x64xf32>,
    return
  }
  func.func @transform_0(%arg0: i32) -> (i32, i32, i32) {
    %c0_i32 = arith.constant 0 : i32
    %c0_i32_0 = arith.constant 0 : i32
    %c0_i32_1 = arith.constant 0 : i32
    return %c0_i32, %arg0, %c0_i32_0 : i32, i32, i32
  }
  func.func @transform_1(%arg0: i32) -> (i32, i32, i32) {
    %c0_i32 = arith.constant 0 : i32
    %c0_i32_0 = arith.constant 0 : i32
    %c0_i32_1 = arith.constant 0 : i32
    %c0_i32_2 = arith.constant 0 : i32
    return %c0_i32, %c0_i32_0, %c0_i32_1 : i32, i32, i32
  }
  func.func @transform_2(%arg0: i32) -> (i32, i32) {
    %c0_i32 = arith.constant 0 : i32
    %c0_i32_0 = arith.constant 0 : i32
    return %arg0, %c0_i32 : i32, i32
  }
}

</mosaic_0001>

<llo_original>
// kernel: tpu_custom_call.1
$region0: #{tpu_custom_call.1}
  #allocation0 [shape = 'u32[]', space=smem, size = 0x4, offset = 0x4, fixed_abs, tag = 'smem constant byte address 0x4 - core index']
  #allocation1 [shape = 'u32[144,128]{1,0:T(1,128)}', space=vmem, size = 0x12000, scoped, tag = 'internal scratch']
  %s0 = inlined_call_operand.vmem [shape: f32[4,128,16], index: 0, kind: input, shape index: {}]
  %s1 = inlined_call_operand.vmem [shape: f32[4,16,64], index: 1, kind: input, shape index: {}]
  %s2 = inlined_call_operand.vmem [shape: f32[128,64], index: 2, kind: output, shape index: {}]
  %s3 = sld [smem:[#allocation0]]
  $region18: #{tpu_custom_call.1} parent=0
    _
  %s5 = ssub.s32 1, %s3
  %s6 = scalar_select 0, %s5, %s3
  // Predicated region
  $region2: #{tpu_custom_call.1} parent=0 // pred_check
    _
  $region3: #{tpu_custom_call.1} parent=0 // pred_check_branch
    %8 = sbr.rel (0) target = $region5
  $region4: #{tpu_custom_call.1} parent=0 // pred_region
    _
  $region5: #{tpu_custom_call.1} parent=0 // pred_fallthru
    _
  // Predicated region
  $region6: #{tpu_custom_call.1} parent=0 // pred_check
    _
  $region7: #{tpu_custom_call.1} parent=0 // pred_check_branch
    %10 = sbr.rel (0) target = $region9
  $region8: #{tpu_custom_call.1} parent=0 // pred_region
    _
  $region9: #{tpu_custom_call.1} parent=0 // pred_fallthru
    _
  %v11 = vld [vmem:[%s0] sm:$0xff]
  %v12 = vld [vmem:[%s0 + $0x8] sm:$0xff]
  %v13 = vld [vmem:[%s0 + $0x10] sm:$0xff]
  %v14 = vld [vmem:[%s0 + $0x18] sm:$0xff]
  %v15 = vld [vmem:[%s0 + $0x20] sm:$0xff]
  %v16 = vld [vmem:[%s0 + $0x28] sm:$0xff]
  %v17 = vld [vmem:[%s0 + $0x30] sm:$0xff]
  %v18 = vld [vmem:[%s0 + $0x38] sm:$0xff]
  %v19 = vld [vmem:[%s0 + $0x40] sm:$0xff]
  %v20 = vld [vmem:[%s0 + $0x48] sm:$0xff]
  %v21 = vld [vmem:[%s0 + $0x50] sm:$0xff]
  %v22 = vld [vmem:[%s0 + $0x58] sm:$0xff]
  %v23 = vld [vmem:[%s0 + $0x60] sm:$0xff]
  %v24 = vld [vmem:[%s0 + $0x68] sm:$0xff]
  %v25 = vld [vmem:[%s0 + $0x70] sm:$0xff]
  %v26 = vld [vmem:[%s0 + $0x78] sm:$0xff]
  %v27 = vld [vmem:[%s1] sm:$0xff]
  %v28 = vld [vmem:[%s1 + $0x8] sm:$0xff]
  %s29 = scalar_lea.vmem %s0, 128
  %v30 = vld [vmem:[%s29] sm:$0xff]
  %v31 = vld [vmem:[%s29 + $0x8] sm:$0xff]
  %v32 = vld [vmem:[%s29 + $0x10] sm:$0xff]
  %v33 = vld [vmem:[%s29 + $0x18] sm:$0xff]
  %v34 = vld [vmem:[%s29 + $0x20] sm:$0xff]
  %v35 = vld [vmem:[%s29 + $0x28] sm:$0xff]
  %v36 = vld [vmem:[%s29 + $0x30] sm:$0xff]
  %v37 = vld [vmem:[%s29 + $0x38] sm:$0xff]
  %v38 = vld [vmem:[%s29 + $0x40] sm:$0xff]
  %v39 = vld [vmem:[%s29 + $0x48] sm:$0xff]
  %v40 = vld [vmem:[%s29 + $0x50] sm:$0xff]
  %v41 = vld [vmem:[%s29 + $0x58] sm:$0xff]
  %v42 = vld [vmem:[%s29 + $0x60] sm:$0xff]
  %v43 = vld [vmem:[%s29 + $0x68] sm:$0xff]
  %v44 = vld [vmem:[%s29 + $0x70] sm:$0xff]
  %v45 = vld [vmem:[%s29 + $0x78] sm:$0xff]
  %s46 = scalar_lea.vmem %s1, 16
  %v47 = vld [vmem:[%s46] sm:$0xff]
  %v48 = vld [vmem:[%s46 + $0x8] sm:$0xff]
  %vm49 = vcmask 130048
  %v51 = vsel %vm49, %v30, 0
  %v54 = vsel %vm49, %v31, 0
  %v57 = vsel %vm49, %v32, 0
  %v60 = vsel %vm49, %v33, 0
  %v63 = vsel %vm49, %v34, 0
  %v66 = vsel %vm49, %v35, 0
  %v69 = vsel %vm49, %v36, 0
  %v72 = vsel %vm49, %v37, 0
  %v75 = vsel %vm49, %v38, 0
  %v78 = vsel %vm49, %v39, 0
  %v81 = vsel %vm49, %v40, 0
  %v84 = vsel %vm49, %v41, 0
  %v87 = vsel %vm49, %v42, 0
  %v90 = vsel %vm49, %v43, 0
  %v93 = vsel %vm49, %v44, 0
  %v96 = vsel %vm49, %v45, 0
  %98 = vmatprep.subr.mxu0 0.0
  %99 = vmatpush1.msra.mxu0 %v47
  %100 = vmatprep.subr.mxu0 0.0
  %101 = vmatpush1.msra.mxu0 %v48
  %102 = vmatprep.subr.mxu0 0.0
  %103 = vmatpush1.msra.mxu0 0.0
  %104 = vmatprep.subr.mxu0 0.0
  %105 = vmatpush1.msra.mxu0 0.0
  %106 = vmatprep.subr.mxu0 0.0
  %107 = vmatpush1.msra.mxu0 0.0
  %108 = vmatprep.subr.mxu0 0.0
  %109 = vmatpush1.msra.mxu0 0.0
  %110 = vmatprep.subr.mxu0 0.0
  %111 = vmatpush1.msra.mxu0 0.0
  %112 = vmatprep.subr.mxu0 0.0
  %113 = vmatpush1.msra.mxu0 0.0
  %114 = vmatprep.subr.mxu0 0.0
  %115 = vmatpush1.msra.mxu0 0.0
  %116 = vmatprep.subr.mxu0 0.0
  %117 = vmatpush1.msra.mxu0 0.0
  %118 = vmatprep.subr.mxu0 0.0
  %119 = vmatpush1.msra.mxu0 0.0
  %120 = vmatprep.subr.mxu0 0.0
  %121 = vmatpush1.msra.mxu0 0.0
  %122 = vmatprep.subr.mxu0 0.0
  %123 = vmatpush1.msra.mxu0 0.0
  %124 = vmatprep.subr.mxu0 0.0
  %125 = vmatpush1.msra.mxu0 0.0
  %126 = vmatprep.subr.mxu0 0.0
  %127 = vmatpush1.msra.mxu0 0.0
  %128 = vmatprep.subr.mxu0 0.0
  %129 = vmatpush1.msra.mxu0 0.0
  %130 = vmatprep.subr.mxu0 0.0
  %131 = vmatpush1.msra.mxu0 0.0
  %132 = vmatprep.subr.mxu0 0.0
  %133 = vmatpush1.msra.mxu0 0.0
  %134 = vmatprep.subr.mxu0 0.0
  %135 = vmatpush1.msra.mxu0 0.0
  %136 = vmatprep.subr.mxu0 0.0
  %137 = vmatpush1.msra.mxu0 0.0
  %138 = vmatprep.subr.mxu0 0.0
  %139 = vmatpush1.msra.mxu0 0.0
  %140 = vmatprep.subr.mxu0 0.0
  %141 = vmatpush1.msra.mxu0 0.0
  %142 = vmatprep.subr.mxu0 0.0
  %143 = vmatpush1.msra.mxu0 0.0
  %144 = vmatprep.subr.mxu0 0.0
  %145 = vmatpush1.msra.mxu0 0.0
  %146 = vmatprep.subr.mxu0 0.0
  %147 = vmatpush1.msra.mxu0 0.0
  %148 = vmatprep.subr.mxu0 0.0
  %149 = vmatpush1.msra.mxu0 0.0
  %150 = vmatprep.subr.mxu0 0.0
  %151 = vmatpush1.msra.mxu0 0.0
  %152 = vmatprep.subr.mxu0 0.0
  %153 = vmatpush1.msra.mxu0 0.0
  %154 = vmatprep.subr.mxu0 0.0
  %155 = vmatpush1.msra.mxu0 0.0
  %156 = vmatprep.subr.mxu0 0.0
  %157 = vmatpush1.msra.mxu0 0.0
  %158 = vmatprep.subr.mxu0 0.0
  %159 = vmatpush1.msra.mxu0 0.0
  %160 = vmatprep.subr.mxu0 0.0
  %161 = vmatpush1.msra.mxu0 0.0
  %162 = vmatprep.mubr.f32.mxu0 0.0
  %163 = vmatmul.mubr.f32.gmra.mrb[0].mxu0 %v51
  %v164 = vpop.f32.mrb[0].mxu0
  %v165 = vadd.f32 0.0, %v164
  %v166 = vpop.f32.mrb[0].mxu0
  %167 = vmatprep.mubr.f32.mxu0 0.0
  %168 = vmatmul.mubr.f32.gmra.mrb[0].mxu0 %v54
  %v169 = vpop.f32.mrb[0].mxu0
  %v170 = vadd.f32 0.0, %v169
  %v171 = vpop.f32.mrb[0].mxu0
  %172 = vmatprep.mubr.f32.mxu0 0.0
  %173 = vmatmul.mubr.f32.gmra.mrb[0].mxu0 %v57
  %v174 = vpop.f32.mrb[0].mxu0
  %v175 = vadd.f32 0.0, %v174
  %v176 = vpop.f32.mrb[0].mxu0
  %177 = vmatprep.mubr.f32.mxu0 0.0
  %178 = vmatmul.mubr.f32.gmra.mrb[0].mxu0 %v60
  %v179 = vpop.f32.mrb[0].mxu0
  %v180 = vadd.f32 0.0, %v179
  %v181 = vpop.f32.mrb[0].mxu0
  %182 = vmatprep.mubr.f32.mxu0 0.0
  %183 = vmatmul.mubr.f32.gmra.mrb[0].mxu0 %v63
  %v184 = vpop.f32.mrb[0].mxu0
  %v185 = vadd.f32 0.0, %v184
  %v186 = vpop.f32.mrb[0].mxu0
  %187 = vmatprep.mubr.f32.mxu0 0.0
  %188 = vmatmul.mubr.f32.gmra.mrb[0].mxu0 %v66
  %v189 = vpop.f32.mrb[0].mxu0
  %v190 = vadd.f32 0.0, %v189
  %v191 = vpop.f32.mrb[0].mxu0
  %192 = vmatprep.mubr.f32.mxu0 0.0
  %193 = vmatmul.mubr.f32.gmra.mrb[0].mxu0 %v69
  %v194 = vpop.f32.mrb[0].mxu0
  %v195 = vadd.f32 0.0, %v194
  %v196 = vpop.f32.mrb[0].mxu0
  %197 = vmatprep.mubr.f32.mxu0 0.0
  %198 = vmatmul.mubr.f32.gmra.mrb[0].mxu0 %v72
  %v199 = vpop.f32.mrb[0].mxu0
  %v200 = vadd.f32 0.0, %v199
  %v201 = vpop.f32.mrb[0].mxu0
  %202 = vmatprep.mubr.f32.mxu0 0.0
  %203 = vmatmul.mubr.f32.gmra.mrb[0].mxu0 %v75
  %v204 = vpop.f32.mrb[0].mxu0
  %v205 = vadd.f32 0.0, %v204
  %v206 = vpop.f32.mrb[0].mxu0
  %207 = vmatprep.mubr.f32.mxu0 0.0
  %208 = vmatmul.mubr.f32.gmra.mrb[0].mxu0 %v78
  %v209 = vpop.f32.mrb[0].mxu0
  %v210 = vadd.f32 0.0, %v209
  %v211 = vpop.f32.mrb[0].mxu0
  %212 = vmatprep.mubr.f32.mxu0 0.0
  %213 = vmatmul.mubr.f32.gmra.mrb[0].mxu0 %v81
  %v214 = vpop.f32.mrb[0].mxu0
  %v215 = vadd.f32 0.0, %v214
  %v216 = vpop.f32.mrb[0].mxu0
  %217 = vmatprep.mubr.f32.mxu0 0.0
  %218 = vmatmul.mubr.f32.gmra.mrb[0].mxu0 %v84
  %v219 = vpop.f32.mrb[0].mxu0
  %v220 = vadd.f32 0.0, %v219
  %v221 = vpop.f32.mrb[0].mxu0
  %222 = vmatprep.mubr.f32.mxu0 0.0
  %223 = vmatmul.mubr.f32.gmra.mrb[0].mxu0 %v87
  %v224 = vpop.f32.mrb[0].mxu0
  %v225 = vadd.f32 0.0, %v224
  %v226 = vpop.f32.mrb[0].mxu0
  %227 = vmatprep.mubr.f32.mxu0 0.0
  %228 = vmatmul.mubr.f32.gmra.mrb[0].mxu0 %v90
  %v229 = vpop.f32.mrb[0].mxu0
  %v230 = vadd.f32 0.0, %v229
  %v231 = vpop.f32.mrb[0].mxu0
  %232 = vmatprep.mubr.f32.mxu0 0.0
  %233 = vmatmul.mubr.f32.gmra.mrb[0].mxu0 %v93
  %v234 = vpop.f32.mrb[0].mxu0
  %v235 = vadd.f32 0.0, %v234
  %v236 = vpop.f32.mrb[0].mxu0
  %237 = vmatprep.mubr.f32.mxu0 0.0
  %238 = vmatmul.mubr.f32.gmra.mrb[0].mxu0 %v96
  %v239 = vpop.f32.mrb[0].mxu0
  %v240 = vadd.f32 0.0, %v239
  %v241 = vpop.f32.mrb[0].mxu0
  %242 = vdwg.mxu0
  %v244 = vsel %vm49, %v11, 0
  %v247 = vsel %vm49, %v12, 0
  %v250 = vsel %vm49, %v13, 0
  %v253 = vsel %vm49, %v14, 0
  %v256 = vsel %vm49, %v15, 0
  %v259 = vsel %vm49, %v16, 0
  %v262 = vsel %vm49, %v17, 0
  %v265 = vsel %vm49, %v18, 0
  %v268 = vsel %vm49, %v19, 0
  %v271 = vsel %vm49, %v20, 0
  %v274 = vsel %vm49, %v21, 0
  %v277 = vsel %vm49, %v22, 0
  %v280 = vsel %vm49, %v23, 0
  %v283 = vsel %vm49, %v24, 0
  %v286 = vsel %vm49, %v25, 0
  %v289 = vsel %vm49, %v26, 0
  %291 = vmatprep.subr.mxu0 0.0
  %292 = vmatpush1.msra.mxu0 %v27
  %293 = vmatprep.subr.mxu0 0.0
  %294 = vmatpush1.msra.mxu0 %v28
  %295 = vmatprep.subr.mxu0 0.0
  %296 = vmatpush1.msra.mxu0 0.0
  %297 = vmatprep.subr.mxu0 0.0
  %298 = vmatpush1.msra.mxu0 0.0
  %299 = vmatprep.subr.mxu0 0.0
  %300 = vmatpush1.msra.mxu0 0.0
  %301 = vmatprep.subr.mxu0 0.0
  %302 = vmatpush1.msra.mxu0 0.0
  %303 = vmatprep.subr.mxu0 0.0
  %304 = vmatpush1.msra.mxu0 0.0
  %305 = vmatprep.subr.mxu0 0.0
  %306 = vmatpush1.msra.mxu0 0.0
  %307 = vmatprep.subr.mxu0 0.0
  %308 = vmatpush1.msra.mxu0 0.0
  %309 = vmatprep.subr.mxu0 0.0
  %310 = vmatpush1.msra.mxu0 0.0
  %311 = vmatprep.subr.mxu0 0.0
  %312 = vmatpush1.msra.mxu0 0.0
  %313 = vmatprep.subr.mxu0 0.0
  %314 = vmatpush1.msra.mxu0 0.0
  %315 = vmatprep.subr.mxu0 0.0
  %316 = vmatpush1.msra.mxu0 0.0
  %317 = vmatprep.subr.mxu0 0.0
  %318 = vmatpush1.msra.mxu0 0.0
  %319 = vmatprep.subr.mxu0 0.0
  %320 = vmatpush1.msra.mxu0 0.0
  %321 = vmatprep.subr.mxu0 0.0
  %322 = vmatpush1.msra.mxu0 0.0
  %323 = vmatprep.subr.mxu0 0.0
  %324 = vmatpush1.msra.mxu0 0.0
  %325 = vmatprep.subr.mxu0 0.0
  %326 = vmatpush1.msra.mxu0 0.0
  %327 = vmatprep.subr.mxu0 0.0
  %328 = vmatpush1.msra.mxu0 0.0
  %329 = vmatprep.subr.mxu0 0.0
  %330 = vmatpush1.msra.mxu0 0.0
  %331 = vmatprep.subr.mxu0 0.0
  %332 = vmatpush1.msra.mxu0 0.0
  %333 = vmatprep.subr.mxu0 0.0
  %334 = vmatpush1.msra.mxu0 0.0
  %335 = vmatprep.subr.mxu0 0.0
  %336 = vmatpush1.msra.mxu0 0.0
  %337 = vmatprep.subr.mxu0 0.0
  %338 = vmatpush1.msra.mxu0 0.0
  %339 = vmatprep.subr.mxu0 0.0
  %340 = vmatpush1.msra.mxu0 0.0
  %341 = vmatprep.subr.mxu0 0.0
  %342 = vmatpush1.msra.mxu0 0.0
  %343 = vmatprep.subr.mxu0 0.0
  %344 = vmatpush1.msra.mxu0 0.0
  %345 = vmatprep.subr.mxu0 0.0
  %346 = vmatpush1.msra.mxu0 0.0
  %347 = vmatprep.subr.mxu0 0.0
  %348 = vmatpush1.msra.mxu0 0.0
  %349 = vmatprep.subr.mxu0 0.0
  %350 = vmatpush1.msra.mxu0 0.0
  %351 = vmatprep.subr.mxu0 0.0
  %352 = vmatpush1.msra.mxu0 0.0
  %353 = vmatprep.subr.mxu0 0.0
  %354 = vmatpush1.msra.mxu0 0.0
  %355 = vmatprep.mubr.f32.mxu0 0.0
  %356 = vmatmul.mubr.f32.gmra.mrb[0].mxu0 %v244
  %v357 = vpop.f32.mrb[0].mxu0
  %v358 = vadd.f32 %v165, %v357
  %v359 = vpop.f32.mrb[0].mxu0
  %360 = vmatprep.mubr.f32.mxu0 0.0
  %361 = vmatmul.mubr.f32.gmra.mrb[0].mxu0 %v247
  %v362 = vpop.f32.mrb[0].mxu0
  %v363 = vadd.f32 %v170, %v362
  %v364 = vpop.f32.mrb[0].mxu0
  %365 = vmatprep.mubr.f32.mxu0 0.0
  %366 = vmatmul.mubr.f32.gmra.mrb[0].mxu0 %v250
  %v367 = vpop.f32.mrb[0].mxu0
  %v368 = vadd.f32 %v175, %v367
  %v369 = vpop.f32.mrb[0].mxu0
  %370 = vmatprep.mubr.f32.mxu0 0.0
  %371 = vmatmul.mubr.f32.gmra.mrb[0].mxu0 %v253
  %v372 = vpop.f32.mrb[0].mxu0
  %v373 = vadd.f32 %v180, %v372
  %v374 = vpop.f32.mrb[0].mxu0
  %375 = vmatprep.mubr.f32.mxu0 0.0
  %376 = vmatmul.mubr.f32.gmra.mrb[0].mxu0 %v256
  %v377 = vpop.f32.mrb[0].mxu0
  %v378 = vadd.f32 %v185, %v377
  %v379 = vpop.f32.mrb[0].mxu0
  %380 = vmatprep.mubr.f32.mxu0 0.0
  %381 = vmatmul.mubr.f32.gmra.mrb[0].mxu0 %v259
  %v382 = vpop.f32.mrb[0].mxu0
  %v383 = vadd.f32 %v190, %v382
  %v384 = vpop.f32.mrb[0].mxu0
  %385 = vmatprep.mubr.f32.mxu0 0.0
  %386 = vmatmul.mubr.f32.gmra.mrb[0].mxu0 %v262
  %v387 = vpop.f32.mrb[0].mxu0
  %v388 = vadd.f32 %v195, %v387
  %v389 = vpop.f32.mrb[0].mxu0
  %390 = vmatprep.mubr.f32.mxu0 0.0
  %391 = vmatmul.mubr.f32.gmra.mrb[0].mxu0 %v265
  %v392 = vpop.f32.mrb[0].mxu0
  %v393 = vadd.f32 %v200, %v392
  %v394 = vpop.f32.mrb[0].mxu0
  %395 = vmatprep.mubr.f32.mxu0 0.0
  %396 = vmatmul.mubr.f32.gmra.mrb[0].mxu0 %v268
  %v397 = vpop.f32.mrb[0].mxu0
  %v398 = vadd.f32 %v205, %v397
  %v399 = vpop.f32.mrb[0].mxu0
  %400 = vmatprep.mubr.f32.mxu0 0.0
  %401 = vmatmul.mubr.f32.gmra.mrb[0].mxu0 %v271
  %v402 = vpop.f32.mrb[0].mxu0
  %v403 = vadd.f32 %v210, %v402
  %v404 = vpop.f32.mrb[0].mxu0
  %405 = vmatprep.mubr.f32.mxu0 0.0
  %406 = vmatmul.mubr.f32.gmra.mrb[0].mxu0 %v274
  %v407 = vpop.f32.mrb[0].mxu0
  %v408 = vadd.f32 %v215, %v407
  %v409 = vpop.f32.mrb[0].mxu0
  %410 = vmatprep.mubr.f32.mxu0 0.0
  %411 = vmatmul.mubr.f32.gmra.mrb[0].mxu0 %v277
  %v412 = vpop.f32.mrb[0].mxu0
  %v413 = vadd.f32 %v220, %v412
  %v414 = vpop.f32.mrb[0].mxu0
  %415 = vmatprep.mubr.f32.mxu0 0.0
  %416 = vmatmul.mubr.f32.gmra.mrb[0].mxu0 %v280
  %v417 = vpop.f32.mrb[0].mxu0
  %v418 = vadd.f32 %v225, %v417
  %v419 = vpop.f32.mrb[0].mxu0
  %420 = vmatprep.mubr.f32.mxu0 0.0
  %421 = vmatmul.mubr.f32.gmra.mrb[0].mxu0 %v283
  %v422 = vpop.f32.mrb[0].mxu0
  %v423 = vadd.f32 %v230, %v422
  %v424 = vpop.f32.mrb[0].mxu0
  %425 = vmatprep.mubr.f32.mxu0 0.0
  %426 = vmatmul.mubr.f32.gmra.mrb[0].mxu0 %v286
  %v427 = vpop.f32.mrb[0].mxu0
  %v428 = vadd.f32 %v235, %v427
  %v429 = vpop.f32.mrb[0].mxu0
  %430 = vmatprep.mubr.f32.mxu0 0.0
  %431 = vmatmul.mubr.f32.gmra.mrb[0].mxu0 %v289
  %v432 = vpop.f32.mrb[0].mxu0
  %v433 = vadd.f32 %v240, %v432
  %v434 = vpop.f32.mrb[0].mxu0
  %435 = vdwg.mxu0
  %s436 = scalar_lea.vmem %s0, 256
  %v437 = vld [vmem:[%s436] sm:$0xff]
  %v438 = vld [vmem:[%s436 + $0x8] sm:$0xff]
  %v439 = vld [vmem:[%s436 + $0x10] sm:$0xff]
  %v440 = vld [vmem:[%s436 + $0x18] sm:$0xff]
  %v441 = vld [vmem:[%s436 + $0x20] sm:$0xff]
  %v442 = vld [vmem:[%s436 + $0x28] sm:$0xff]
  %v443 = vld [vmem:[%s436 + $0x30] sm:$0xff]
  %v444 = vld [vmem:[%s436 + $0x38] sm:$0xff]
  %v445 = vld [vmem:[%s436 + $0x40] sm:$0xff]
  %v446 = vld [vmem:[%s436 + $0x48] sm:$0xff]
  %v447 = vld [vmem:[%s436 + $0x50] sm:$0xff]
  %v448 = vld [vmem:[%s436 + $0x58] sm:$0xff]
  %v449 = vld [vmem:[%s436 + $0x60] sm:$0xff]
  %v450 = vld [vmem:[%s436 + $0x68] sm:$0xff]
  %v451 = vld [vmem:[%s436 + $0x70] sm:$0xff]
  %v452 = vld [vmem:[%s436 + $0x78] sm:$0xff]
  %s453 = scalar_lea.vmem %s1, 32
  %v454 = vld [vmem:[%s453] sm:$0xff]
  %v455 = vld [vmem:[%s453 + $0x8] sm:$0xff]
  %v457 = vsel %vm49, %v437, 0
  %v460 = vsel %vm49, %v438, 0
  %v463 = vsel %vm49, %v439, 0
  %v466 = vsel %vm49, %v440, 0
  %v469 = vsel %vm49, %v441, 0
  %v472 = vsel %vm49, %v442, 0
  %v475 = vsel %vm49, %v443, 0
  %v478 = vsel %vm49, %v444, 0
  %v481 = vsel %vm49, %v445, 0
  %v484 = vsel %vm49, %v446, 0
  %v487 = vsel %vm49, %v447, 0
  %v490 = vsel %vm49, %v448, 0
  %v493 = vsel %vm49, %v449, 0
  %v496 = vsel %vm49, %v450, 0
  %v499 = vsel %vm49, %v451, 0
  %v502 = vsel %vm49, %v452, 0
  %504 = vmatprep.subr.mxu0 0.0
  %505 = vmatpush1.msra.mxu0 %v454
  %506 = vmatprep.subr.mxu0 0.0
  %507 = vmatpush1.msra.mxu0 %v455
  %508 = vmatprep.subr.mxu0 0.0
  %509 = vmatpush1.msra.mxu0 0.0
  %510 = vmatprep.subr.mxu0 0.0
  %511 = vmatpush1.msra.mxu0 0.0
  %512 = vmatprep.subr.mxu0 0.0
  %513 = vmatpush1.msra.mxu0 0.0
  %514 = vmatprep.subr.mxu0 0.0
  %515 = vmatpush1.msra.mxu0 0.0
  %516 = vmatprep.subr.mxu0 0.0
  %517 = vmatpush1.msra.mxu0 0.0
  %518 = vmatprep.subr.mxu0 0.0
  %519 = vmatpush1.msra.mxu0 0.0
  %520 = vmatprep.subr.mxu0 0.0
  %521 = vmatpush1.msra.mxu0 0.0
  %522 = vmatprep.subr.mxu0 0.0
  %523 = vmatpush1.msra.mxu0 0.0
  %524 = vmatprep.subr.mxu0 0.0
  %525 = vmatpush1.msra.mxu0 0.0
  %526 = vmatprep.subr.mxu0 0.0
  %527 = vmatpush1.msra.mxu0 0.0
  %528 = vmatprep.subr.mxu0 0.0
  %529 = vmatpush1.msra.mxu0 0.0
  %530 = vmatprep.subr.mxu0 0.0
  %531 = vmatpush1.msra.mxu0 0.0
  %532 = vmatprep.subr.mxu0 0.0
  %533 = vmatpush1.msra.mxu0 0.0
  %534 = vmatprep.subr.mxu0 0.0
  %535 = vmatpush1.msra.mxu0 0.0
  %536 = vmatprep.subr.mxu0 0.0
  %537 = vmatpush1.msra.mxu0 0.0
  %538 = vmatprep.subr.mxu0 0.0
  %539 = vmatpush1.msra.mxu0 0.0
  %540 = vmatprep.subr.mxu0 0.0
  %541 = vmatpush1.msra.mxu0 0.0
  %542 = vmatprep.subr.mxu0 0.0
  %543 = vmatpush1.msra.mxu0 0.0
  %544 = vmatprep.subr.mxu0 0.0
  %545 = vmatpush1.msra.mxu0 0.0
  %546 = vmatprep.subr.mxu0 0.0
  %547 = vmatpush1.msra.mxu0 0.0
  %548 = vmatprep.subr.mxu0 0.0
  %549 = vmatpush1.msra.mxu0 0.0
  %550 = vmatprep.subr.mxu0 0.0
  %551 = vmatpush1.msra.mxu0 0.0
  %552 = vmatprep.subr.mxu0 0.0
  %553 = vmatpush1.msra.mxu0 0.0
  %554 = vmatprep.subr.mxu0 0.0
  %555 = vmatpush1.msra.mxu0 0.0
  %556 = vmatprep.subr.mxu0 0.0
  %557 = vmatpush1.msra.mxu0 0.0
  %558 = vmatprep.subr.mxu0 0.0
  %559 = vmatpush1.msra.mxu0 0.0
  %560 = vmatprep.subr.mxu0 0.0
  %561 = vmatpush1.msra.mxu0 0.0
  %562 = vmatprep.subr.mxu0 0.0
  %563 = vmatpush1.msra.mxu0 0.0
  %564 = vmatprep.subr.mxu0 0.0
  %565 = vmatpush1.msra.mxu0 0.0
  %566 = vmatprep.subr.mxu0 0.0
  %567 = vmatpush1.msra.mxu0 0.0
  %568 = vmatprep.mubr.f32.mxu0 0.0
  %569 = vmatmul.mubr.f32.gmra.mrb[0].mxu0 %v457
  %v570 = vpop.f32.mrb[0].mxu0
  %v571 = vadd.f32 0.0, %v570
  %v572 = vpop.f32.mrb[0].mxu0
  %573 = vmatprep.mubr.f32.mxu0 0.0
  %574 = vmatmul.mubr.f32.gmra.mrb[0].mxu0 %v460
  %v575 = vpop.f32.mrb[0].mxu0
  %v576 = vadd.f32 0.0, %v575
  %v577 = vpop.f32.mrb[0].mxu0
  %578 = vmatprep.mubr.f32.mxu0 0.0
  %579 = vmatmul.mubr.f32.gmra.mrb[0].mxu0 %v463
  %v580 = vpop.f32.mrb[0].mxu0
  %v581 = vadd.f32 0.0, %v580
  %v582 = vpop.f32.mrb[0].mxu0
  %583 = vmatprep.mubr.f32.mxu0 0.0
  %584 = vmatmul.mubr.f32.gmra.mrb[0].mxu0 %v466
  %v585 = vpop.f32.mrb[0].mxu0
  %v586 = vadd.f32 0.0, %v585
  %v587 = vpop.f32.mrb[0].mxu0
  %588 = vmatprep.mubr.f32.mxu0 0.0
  %589 = vmatmul.mubr.f32.gmra.mrb[0].mxu0 %v469
  %v590 = vpop.f32.mrb[0].mxu0
  %v591 = vadd.f32 0.0, %v590
  %v592 = vpop.f32.mrb[0].mxu0
  %593 = vmatprep.mubr.f32.mxu0 0.0
  %594 = vmatmul.mubr.f32.gmra.mrb[0].mxu0 %v472
  %v595 = vpop.f32.mrb[0].mxu0
  %v596 = vadd.f32 0.0, %v595
  %v597 = vpop.f32.mrb[0].mxu0
  %598 = vmatprep.mubr.f32.mxu0 0.0
  %599 = vmatmul.mubr.f32.gmra.mrb[0].mxu0 %v475
  %v600 = vpop.f32.mrb[0].mxu0
  %v601 = vadd.f32 0.0, %v600
  %v602 = vpop.f32.mrb[0].mxu0
  %603 = vmatprep.mubr.f32.mxu0 0.0
  %604 = vmatmul.mubr.f32.gmra.mrb[0].mxu0 %v478
  %v605 = vpop.f32.mrb[0].mxu0
  %v606 = vadd.f32 0.0, %v605
  %v607 = vpop.f32.mrb[0].mxu0
  %608 = vmatprep.mubr.f32.mxu0 0.0
  %609 = vmatmul.mubr.f32.gmra.mrb[0].mxu0 %v481
  %v610 = vpop.f32.mrb[0].mxu0
  %v611 = vadd.f32 0.0, %v610
  %v612 = vpop.f32.mrb[0].mxu0
  %613 = vmatprep.mubr.f32.mxu0 0.0
  %614 = vmatmul.mubr.f32.gmra.mrb[0].mxu0 %v484
  %v615 = vpop.f32.mrb[0].mxu0
  %v616 = vadd.f32 0.0, %v615
  %v617 = vpop.f32.mrb[0].mxu0
  %618 = vmatprep.mubr.f32.mxu0 0.0
  %619 = vmatmul.mubr.f32.gmra.mrb[0].mxu0 %v487
  %v620 = vpop.f32.mrb[0].mxu0
  %v621 = vadd.f32 0.0, %v620
  %v622 = vpop.f32.mrb[0].mxu0
  %623 = vmatprep.mubr.f32.mxu0 0.0
  %624 = vmatmul.mubr.f32.gmra.mrb[0].mxu0 %v490
  %v625 = vpop.f32.mrb[0].mxu0
  %v626 = vadd.f32 0.0, %v625
  %v627 = vpop.f32.mrb[0].mxu0
  %628 = vmatprep.mubr.f32.mxu0 0.0
  %629 = vmatmul.mubr.f32.gmra.mrb[0].mxu0 %v493
  %v630 = vpop.f32.mrb[0].mxu0
  %v631 = vadd.f32 0.0, %v630
  %v632 = vpop.f32.mrb[0].mxu0
  %633 = vmatprep.mubr.f32.mxu0 0.0
  %634 = vmatmul.mubr.f32.gmra.mrb[0].mxu0 %v496
  %v635 = vpop.f32.mrb[0].mxu0
  %v636 = vadd.f32 0.0, %v635
  %v637 = vpop.f32.mrb[0].mxu0
  %638 = vmatprep.mubr.f32.mxu0 0.0
  %639 = vmatmul.mubr.f32.gmra.mrb[0].mxu0 %v499
  %v640 = vpop.f32.mrb[0].mxu0
  %v641 = vadd.f32 0.0, %v640
  %v642 = vpop.f32.mrb[0].mxu0
  %643 = vmatprep.mubr.f32.mxu0 0.0
  %644 = vmatmul.mubr.f32.gmra.mrb[0].mxu0 %v502
  %v645 = vpop.f32.mrb[0].mxu0
  %v646 = vadd.f32 0.0, %v645
  %v647 = vpop.f32.mrb[0].mxu0
  %648 = vdwg.mxu0
  %v649 = vadd.f32 %v358, %v571
  %v650 = vadd.f32 %v363, %v576
  %v651 = vadd.f32 %v368, %v581
  %v652 = vadd.f32 %v373, %v586
  %v653 = vadd.f32 %v378, %v591
  %v654 = vadd.f32 %v383, %v596
  %v655 = vadd.f32 %v388, %v601
  %v656 = vadd.f32 %v393, %v606
  %v657 = vadd.f32 %v398, %v611
  %v658 = vadd.f32 %v403, %v616
  %v659 = vadd.f32 %v408, %v621
  %v660 = vadd.f32 %v413, %v626
  %v661 = vadd.f32 %v418, %v631
  %v662 = vadd.f32 %v423, %v636
  %v663 = vadd.f32 %v428, %v641
  %v664 = vadd.f32 %v433, %v646
  %s665 = scalar_lea.vmem %s0, 384
  %v666 = vld [vmem:[%s665] sm:$0xff]
  %v667 = vld [vmem:[%s665 + $0x8] sm:$0xff]
  %v668 = vld [vmem:[%s665 + $0x10] sm:$0xff]
  %v669 = vld [vmem:[%s665 + $0x18] sm:$0xff]
  %v670 = vld [vmem:[%s665 + $0x20] sm:$0xff]
  %v671 = vld [vmem:[%s665 + $0x28] sm:$0xff]
  %v672 = vld [vmem:[%s665 + $0x30] sm:$0xff]
  %v673 = vld [vmem:[%s665 + $0x38] sm:$0xff]
  %v674 = vld [vmem:[%s665 + $0x40] sm:$0xff]
  %v675 = vld [vmem:[%s665 + $0x48] sm:$0xff]
  %v676 = vld [vmem:[%s665 + $0x50] sm:$0xff]
  %v677 = vld [vmem:[%s665 + $0x58] sm:$0xff]
  %v678 = vld [vmem:[%s665 + $0x60] sm:$0xff]
  %v679 = vld [vmem:[%s665 + $0x68] sm:$0xff]
  %v680 = vld [vmem:[%s665 + $0x70] sm:$0xff]
  %v681 = vld [vmem:[%s665 + $0x78] sm:$0xff]
  %s682 = scalar_lea.vmem %s1, 48
  %v683 = vld [vmem:[%s682] sm:$0xff]
  %v684 = vld [vmem:[%s682 + $0x8] sm:$0xff]
  %v686 = vsel %vm49, %v666, 0
  %v689 = vsel %vm49, %v667, 0
  %v692 = vsel %vm49, %v668, 0
  %v695 = vsel %vm49, %v669, 0
  %v698 = vsel %vm49, %v670, 0
  %v701 = vsel %vm49, %v671, 0
  %v704 = vsel %vm49, %v672, 0
  %v707 = vsel %vm49, %v673, 0
  %v710 = vsel %vm49, %v674, 0
  %v713 = vsel %vm49, %v675, 0
  %v716 = vsel %vm49, %v676, 0
  %v719 = vsel %vm49, %v677, 0
  %v722 = vsel %vm49, %v678, 0
  %v725 = vsel %vm49, %v679, 0
  %v728 = vsel %vm49, %v680, 0
  %v731 = vsel %vm49, %v681, 0
  %733 = vmatprep.subr.mxu0 0.0
  %734 = vmatpush1.msra.mxu0 %v683
  %735 = vmatprep.subr.mxu0 0.0
  %736 = vmatpush1.msra.mxu0 %v684
  %737 = vmatprep.subr.mxu0 0.0
  %738 = vmatpush1.msra.mxu0 0.0
  %739 = vmatprep.subr.mxu0 0.0
  %740 = vmatpush1.msra.mxu0 0.0
  %741 = vmatprep.subr.mxu0 0.0
  %742 = vmatpush1.msra.mxu0 0.0
  %743 = vmatprep.subr.mxu0 0.0
  %744 = vmatpush1.msra.mxu0 0.0
  %745 = vmatprep.subr.mxu0 0.0
  %746 = vmatpush1.msra.mxu0 0.0
  %747 = vmatprep.subr.mxu0 0.0
  %748 = vmatpush1.msra.mxu0 0.0
  %749 = vmatprep.subr.mxu0 0.0
  %750 = vmatpush1.msra.mxu0 0.0
  %751 = vmatprep.subr.mxu0 0.0
  %752 = vmatpush1.msra.mxu0 0.0
  %753 = vmatprep.subr.mxu0 0.0
  %754 = vmatpush1.msra.mxu0 0.0
  %755 = vmatprep.subr.mxu0 0.0
  %756 = vmatpush1.msra.mxu0 0.0
  %757 = vmatprep.subr.mxu0 0.0
  %758 = vmatpush1.msra.mxu0 0.0
  %759 = vmatprep.subr.mxu0 0.0
  %760 = vmatpush1.msra.mxu0 0.0
  %761 = vmatprep.subr.mxu0 0.0
  %762 = vmatpush1.msra.mxu0 0.0
  %763 = vmatprep.subr.mxu0 0.0
  %764 = vmatpush1.msra.mxu0 0.0
  %765 = vmatprep.subr.mxu0 0.0
  %766 = vmatpush1.msra.mxu0 0.0
  %767 = vmatprep.subr.mxu0 0.0
  %768 = vmatpush1.msra.mxu0 0.0
  %769 = vmatprep.subr.mxu0 0.0
  %770 = vmatpush1.msra.mxu0 0.0
  %771 = vmatprep.subr.mxu0 0.0
  %772 = vmatpush1.msra.mxu0 0.0
  %773 = vmatprep.subr.mxu0 0.0
  %774 = vmatpush1.msra.mxu0 0.0
  %775 = vmatprep.subr.mxu0 0.0
  %776 = vmatpush1.msra.mxu0 0.0
  %777 = vmatprep.subr.mxu0 0.0
  %778 = vmatpush1.msra.mxu0 0.0
  %779 = vmatprep.subr.mxu0 0.0
  %780 = vmatpush1.msra.mxu0 0.0
  %781 = vmatprep.subr.mxu0 0.0
  %782 = vmatpush1.msra.mxu0 0.0
  %783 = vmatprep.subr.mxu0 0.0
  %784 = vmatpush1.msra.mxu0 0.0
  %785 = vmatprep.subr.mxu0 0.0
  %786 = vmatpush1.msra.mxu0 0.0
  %787 = vmatprep.subr.mxu0 0.0
  %788 = vmatpush1.msra.mxu0 0.0
  %789 = vmatprep.subr.mxu0 0.0
  %790 = vmatpush1.msra.mxu0 0.0
  %791 = vmatprep.subr.mxu0 0.0
  %792 = vmatpush1.msra.mxu0 0.0
  %793 = vmatprep.subr.mxu0 0.0
  %794 = vmatpush1.msra.mxu0 0.0
  %795 = vmatprep.subr.mxu0 0.0
  %796 = vmatpush1.msra.mxu0 0.0
  %797 = vmatprep.mubr.f32.mxu0 0.0
  %798 = vmatmul.mubr.f32.gmra.mrb[0].mxu0 %v686
  %v799 = vpop.f32.mrb[0].mxu0
  %v800 = vadd.f32 0.0, %v799
  %v801 = vpop.f32.mrb[0].mxu0
  %802 = vmatprep.mubr.f32.mxu0 0.0
  %803 = vmatmul.mubr.f32.gmra.mrb[0].mxu0 %v689
  %v804 = vpop.f32.mrb[0].mxu0
  %v805 = vadd.f32 0.0, %v804
  %v806 = vpop.f32.mrb[0].mxu0
  %807 = vmatprep.mubr.f32.mxu0 0.0
  %808 = vmatmul.mubr.f32.gmra.mrb[0].mxu0 %v692
  %v809 = vpop.f32.mrb[0].mxu0
  %v810 = vadd.f32 0.0, %v809
  %v811 = vpop.f32.mrb[0].mxu0
  %812 = vmatprep.mubr.f32.mxu0 0.0
  %813 = vmatmul.mubr.f32.gmra.mrb[0].mxu0 %v695
  %v814 = vpop.f32.mrb[0].mxu0
  %v815 = vadd.f32 0.0, %v814
  %v816 = vpop.f32.mrb[0].mxu0
  %817 = vmatprep.mubr.f32.mxu0 0.0
  %818 = vmatmul.mubr.f32.gmra.mrb[0].mxu0 %v698
  %v819 = vpop.f32.mrb[0].mxu0
  %v820 = vadd.f32 0.0, %v819
  %v821 = vpop.f32.mrb[0].mxu0
  %822 = vmatprep.mubr.f32.mxu0 0.0
  %823 = vmatmul.mubr.f32.gmra.mrb[0].mxu0 %v701
  %v824 = vpop.f32.mrb[0].mxu0
  %v825 = vadd.f32 0.0, %v824
  %v826 = vpop.f32.mrb[0].mxu0
  %827 = vmatprep.mubr.f32.mxu0 0.0
  %828 = vmatmul.mubr.f32.gmra.mrb[0].mxu0 %v704
  %v829 = vpop.f32.mrb[0].mxu0
  %v830 = vadd.f32 0.0, %v829
  %v831 = vpop.f32.mrb[0].mxu0
  %832 = vmatprep.mubr.f32.mxu0 0.0
  %833 = vmatmul.mubr.f32.gmra.mrb[0].mxu0 %v707
  %v834 = vpop.f32.mrb[0].mxu0
  %v835 = vadd.f32 0.0, %v834
  %v836 = vpop.f32.mrb[0].mxu0
  %837 = vmatprep.mubr.f32.mxu0 0.0
  %838 = vmatmul.mubr.f32.gmra.mrb[0].mxu0 %v710
  %v839 = vpop.f32.mrb[0].mxu0
  %v840 = vadd.f32 0.0, %v839
  %v841 = vpop.f32.mrb[0].mxu0
  %842 = vmatprep.mubr.f32.mxu0 0.0
  %843 = vmatmul.mubr.f32.gmra.mrb[0].mxu0 %v713
  %v844 = vpop.f32.mrb[0].mxu0
  %v845 = vadd.f32 0.0, %v844
  %v846 = vpop.f32.mrb[0].mxu0
  %847 = vmatprep.mubr.f32.mxu0 0.0
  %848 = vmatmul.mubr.f32.gmra.mrb[0].mxu0 %v716
  %v849 = vpop.f32.mrb[0].mxu0
  %v850 = vadd.f32 0.0, %v849
  %v851 = vpop.f32.mrb[0].mxu0
  %852 = vmatprep.mubr.f32.mxu0 0.0
  %853 = vmatmul.mubr.f32.gmra.mrb[0].mxu0 %v719
  %v854 = vpop.f32.mrb[0].mxu0
  %v855 = vadd.f32 0.0, %v854
  %v856 = vpop.f32.mrb[0].mxu0
  %857 = vmatprep.mubr.f32.mxu0 0.0
  %858 = vmatmul.mubr.f32.gmra.mrb[0].mxu0 %v722
  %v859 = vpop.f32.mrb[0].mxu0
  %v860 = vadd.f32 0.0, %v859
  %v861 = vpop.f32.mrb[0].mxu0
  %862 = vmatprep.mubr.f32.mxu0 0.0
  %863 = vmatmul.mubr.f32.gmra.mrb[0].mxu0 %v725
  %v864 = vpop.f32.mrb[0].mxu0
  %v865 = vadd.f32 0.0, %v864
  %v866 = vpop.f32.mrb[0].mxu0
  %867 = vmatprep.mubr.f32.mxu0 0.0
  %868 = vmatmul.mubr.f32.gmra.mrb[0].mxu0 %v728
  %v869 = vpop.f32.mrb[0].mxu0
  %v870 = vadd.f32 0.0, %v869
  %v871 = vpop.f32.mrb[0].mxu0
  %872 = vmatprep.mubr.f32.mxu0 0.0
  %873 = vmatmul.mubr.f32.gmra.mrb[0].mxu0 %v731
  %v874 = vpop.f32.mrb[0].mxu0
  %v875 = vadd.f32 0.0, %v874
  %v876 = vpop.f32.mrb[0].mxu0
  %877 = vdwg.mxu0
  %v878 = vadd.f32 %v649, %v800
  %v879 = vadd.f32 %v650, %v805
  %v880 = vadd.f32 %v651, %v810
  %v881 = vadd.f32 %v652, %v815
  %v882 = vadd.f32 %v653, %v820
  %v883 = vadd.f32 %v654, %v825
  %v884 = vadd.f32 %v655, %v830
  %v885 = vadd.f32 %v656, %v835
  %v886 = vadd.f32 %v657, %v840
  %v887 = vadd.f32 %v658, %v845
  %v888 = vadd.f32 %v659, %v850
  %v889 = vadd.f32 %v660, %v855
  %v890 = vadd.f32 %v661, %v860
  %v891 = vadd.f32 %v662, %v865
  %v892 = vadd.f32 %v663, %v870
  %v893 = vadd.f32 %v664, %v875
  %vm894 = vcmask 523264
  %895 = vst.msk [vmem:[%s2] sm:$0xff] %vm894, %v878
  %896 = vst.msk [vmem:[%s2 + $0x8] sm:$0xff] %vm894, %v879
  %897 = vst.msk [vmem:[%s2 + $0x10] sm:$0xff] %vm894, %v880
  %898 = vst.msk [vmem:[%s2 + $0x18] sm:$0xff] %vm894, %v881
  %899 = vst.msk [vmem:[%s2 + $0x20] sm:$0xff] %vm894, %v882
  %900 = vst.msk [vmem:[%s2 + $0x28] sm:$0xff] %vm894, %v883
  %901 = vst.msk [vmem:[%s2 + $0x30] sm:$0xff] %vm894, %v884
  %902 = vst.msk [vmem:[%s2 + $0x38] sm:$0xff] %vm894, %v885
  %903 = vst.msk [vmem:[%s2 + $0x40] sm:$0xff] %vm894, %v886
  %904 = vst.msk [vmem:[%s2 + $0x48] sm:$0xff] %vm894, %v887
  %905 = vst.msk [vmem:[%s2 + $0x50] sm:$0xff] %vm894, %v888
  %906 = vst.msk [vmem:[%s2 + $0x58] sm:$0xff] %vm894, %v889
  %907 = vst.msk [vmem:[%s2 + $0x60] sm:$0xff] %vm894, %v890
  %908 = vst.msk [vmem:[%s2 + $0x68] sm:$0xff] %vm894, %v891
  %909 = vst.msk [vmem:[%s2 + $0x70] sm:$0xff] %vm894, %v892
  %910 = vst.msk [vmem:[%s2 + $0x78] sm:$0xff] %vm894, %v893
  // Predicated region
  $region10: #{tpu_custom_call.1} parent=0 // pred_check
    _
  $region11: #{tpu_custom_call.1} parent=0 // pred_check_branch
    %912 = sbr.rel (0) target = $region13
  $region12: #{tpu_custom_call.1} parent=0 // pred_region
    _
  $region13: #{tpu_custom_call.1} parent=0 // pred_fallthru
    _
  // Predicated region
  $region14: #{tpu_custom_call.1} parent=0 // pred_check
    _
  $region15: #{tpu_custom_call.1} parent=0 // pred_check_branch
    %914 = sbr.rel (0) target = $region17
  $region16: #{tpu_custom_call.1} parent=0 // pred_region
    _
  $region17: #{tpu_custom_call.1} parent=0 // pred_fallthru
    _

</llo_original>
